<compile_context>
chip_gen: v7x
topology: tpu7x:2x2x1
jax: 0.10.0
libtpu: 0.0.40
codegen_flags: <defaults>
</compile_context>

<pallas_src>
import functools

import jax
import jax.numpy as jnp
import numpy as np
from jax.experimental import pallas as pl
from jax.experimental.pallas import tpu as pltpu


# --------------------------- kernels -----------------------------------------
def _cert_kernel(flow_ref, cert_ref, lowres_ref, ah_ref, awt_ref,
                 cert_out_ref, *, factor):
    """One grid step == one (row-tile, batch). Upsample path (factor > 0)."""
    fx = flow_ref[0, 0]            # (tH, W)  x-component of query->support flow
    fy = flow_ref[0, 1]            # (tH, W)
    logits = cert_ref[0, 0]        # (tH, W)  scale-1 certainty (logits)
    lr = lowres_ref[0, 0]          # (h16, w16) scale-16 certainty (logits)

    # --- F.interpolate(..., mode='bilinear', align_corners=False) ------------
    # Separable bilinear upsample, row pass first so per-step MXU work scales
    # with the tile:  (tH,h16)@(h16,w16) -> (tH,w16), then (tH,w16)@(w16,W).
    # Default f32 MXU precision is sufficient: result feeds a sigmoid and a
    # 0.15 threshold downstream.
    tmp = jnp.dot(ah_ref[...], lr, preferred_element_type=jnp.float32)       # (tH, w16)
    lr_up = jnp.dot(tmp, awt_ref[...], preferred_element_type=jnp.float32)   # (tH, W)

    # factor * low_res_certainty * (low_res_certainty < 0)  ==  factor * min(lr_up, 0)
    low_term = factor * jnp.minimum(lr_up, 0.0)

    # dense_certainty = sigmoid(cert - low_res_certainty)
    c = jax.nn.sigmoid(logits - low_term)

    # zero out certainty where the predicted flow leaves [-1, 1]
    wrong = (jnp.abs(fx) > 1.0) | (jnp.abs(fy) > 1.0)
    cert_out_ref[0] = jnp.where(wrong, 0.0, c).astype(cert_out_ref.dtype)


def _cert_kernel_noup(flow_ref, cert_ref, cert_out_ref):
    """selected_scale >= 16: factor == 0, no upsample / low-res term at all."""
    fx = flow_ref[0, 0]
    fy = flow_ref[0, 1]
    c = jax.nn.sigmoid(cert_ref[0, 0])
    wrong = (jnp.abs(fx) > 1.0) | (jnp.abs(fy) > 1.0)
    cert_out_ref[0] = jnp.where(wrong, 0.0, c).astype(cert_out_ref.dtype)


# --------------------------- host-side helpers --------------------------------
def bilinear_matrix(out_size, in_size):
    """Row-interpolation matrix equivalent to torch bilinear, align_corners=False."""
    i = jnp.arange(out_size, dtype=jnp.float32)
    src = (i + 0.5) * (in_size / out_size) - 0.5
    x0 = jnp.floor(src)
    w = src - x0
    x0c = jnp.clip(x0, 0, in_size - 1).astype(jnp.int32)
    x1c = jnp.clip(x0 + 1.0, 0, in_size - 1).astype(jnp.int32)
    eye = jnp.eye(in_size, dtype=jnp.float32)
    return (1.0 - w)[:, None] * eye[x0c] + w[:, None] * eye[x1c]


def _vmem_budget_bytes():
    """Generation-aware VMEM budget (~60% of physical per-core VMEM).

    v5e/v6e: 128 MiB -> ~76 MiB, v7x: 64 MiB -> ~38 MiB.  Well above the
    16/32 MiB scoped defaults, with headroom for compiler temporaries.
    """
    try:
        phys = int(pltpu.get_tpu_info().vmem_capacity_bytes)
    except Exception:
        phys = 64 << 20   # conservative fallback (v7x per-TC)
    return int(phys * 0.6)


def _choose_tile_h(H, W, cert_bytes, *, align=8, target_bytes=12 << 20,
                   vmem_budget=None):
    """Largest row tile that (a) moves ~target_bytes HBM traffic per grid step
    (amortizes ~0.35us/step overhead) and (b) keeps the double-buffered working
    set inside the per-core VMEM budget."""
    if vmem_budget is None:
        vmem_budget = _vmem_budget_bytes()
    # per output row per step: flow (2 planes) + cert (1 plane) read in f32,
    # dense certainty written in cert_bytes.
    per_row = W * (2 * 4 + 4 + cert_bytes)
    rows_target = target_bytes // per_row
    rows_vmem = int(vmem_budget * 0.75) // (2 * per_row)   # 2x: double buffering
    rows = int(min(rows_target, rows_vmem))
    if rows >= H:
        return H
    return min(H, max(align, (rows // align) * align))


def dkm_dense_certainty(flow, cert, lowres_cert=None, *, selected_scale=1,
                        tile_h=None, cert_dtype=jnp.bfloat16, vmem_budget=None):
    """Pallas kernel for the dense-certainty part of dkmWrapper.parse_output.

    flow:        (B, 2, H, W) float32   dense_corresps[scale]['dense_flow']      (NCHW)
    cert:        (B, 1, H, W) float32   dense_corresps[scale]['dense_certainty'] (NCHW)
    lowres_cert: (B, 1, h, w) float32   dense_corresps[16]['dense_certainty']    (NCHW)

    Returns dense_certainty (B, H, W) in `cert_dtype`.  Clamped flow / warp /
    query coordinates / pixel coordinates are produced downstream by cheap
    fused XLA ops (build_warp / to_pixel_coordinates), so the kernel writes
    only one plane per batch element.
    """
    B, _, H, W = flow.shape
    factor = 0.5 if selected_scale < 16 else 0.0
    cert_bytes = jnp.dtype(cert_dtype).itemsize
    align = 16 if cert_bytes < 4 else 8        # sublane packing for <32-bit outputs
    if vmem_budget is None:
        vmem_budget = _vmem_budget_bytes()
    tH = tile_h if tile_h is not None else _choose_tile_h(
        H, W, cert_bytes, align=align, vmem_budget=vmem_budget)
    n_row_tiles = pl.cdiv(H, tH)               # padded edge tile is allowed

    out_shape = jax.ShapeDtypeStruct((B, H, W), cert_dtype)
    # Row-tile axis leads so megacore (v7x) splits on it even at B=1.
    flow_spec = pl.BlockSpec((1, 2, tH, W), lambda r, b: (b, 0, r, 0))
    cert_spec = pl.BlockSpec((1, 1, tH, W), lambda r, b: (b, 0, r, 0))
    out_spec = pl.BlockSpec((1, tH, W), lambda r, b: (b, r, 0))
    cparams = pltpu.CompilerParams(
        dimension_semantics=("parallel", "parallel"),
        vmem_limit_bytes=int(vmem_budget))

    if factor == 0.0 or lowres_cert is None:
        # selected_scale >= 16: skip upsample matmuls and lowres/a_h/a_wt DMAs.
        return pl.pallas_call(
            _cert_kernel_noup,
            out_shape=out_shape,
            grid_spec=pltpu.PrefetchScalarGridSpec(
                num_scalar_prefetch=0,
                grid=(n_row_tiles, B),
                in_specs=[flow_spec, cert_spec],
                out_specs=out_spec),
            compiler_params=cparams,
        )(flow, cert)

    h16, w16 = lowres_cert.shape[-2:]
    a_h = bilinear_matrix(H, h16)            # (H, h16), row-tiled per grid step
    a_wt = bilinear_matrix(W, w16).T         # (w16, W), lane-dense, kept whole

    kern = functools.partial(_cert_kernel, factor=factor)

    return pl.pallas_call(
        kern,
        out_shape=out_shape,
        grid_spec=pltpu.PrefetchScalarGridSpec(
            num_scalar_prefetch=0,
            grid=(n_row_tiles, B),
            in_specs=[
                flow_spec,
                cert_spec,
                pl.BlockSpec((1, 1, h16, w16), lambda r, b: (b, 0, 0, 0)),
                pl.BlockSpec((tH, h16), lambda r, b: (r, 0)),
                pl.BlockSpec((w16, W), lambda r, b: (0, 0)),
            ],
            out_specs=out_spec),
        compiler_params=cparams,
    )(flow, cert, lowres_cert, a_h, a_wt)


# ---- downstream (cheap fused XLA): coords, warp (with clamp), kpts -----------
def query_coords_nhwc(H, W):
    ys = jnp.linspace(-1 + 1.0 / H, 1 - 1.0 / H, H, dtype=jnp.float32)
    xs = jnp.linspace(-1 + 1.0 / W, 1 - 1.0 / W, W, dtype=jnp.float32)
    qy, qx = jnp.meshgrid(ys, xs, indexing='ij')
    return jnp.stack([qx, qy], axis=-1)                       # (H, W, 2)


def build_warp(flow_nchw):
    """warp = cat(query_coords, clamp(flow, -1, 1)), NHWC, torch channel order.

    The clamp is folded here (fuses into the NCHW->NHWC transpose) so the
    kernel does not have to write the clamped flow planes.
    """
    B, _, H, W = flow_nchw.shape
    qc = jnp.broadcast_to(query_coords_nhwc(H, W)[None], (B, H, W, 2))
    f = jnp.clip(jnp.transpose(flow_nchw, (0, 2, 3, 1)), -1.0, 1.0)
    return jnp.concatenate([qc, f], axis=-1)                  # (B, H, W, 4)


def to_pixel_coordinates(warp, hs, ws):
    """model.to_pixel_coordinates: [-1,1] -> pixel coords for both images."""
    scale = jnp.array([ws * 0.5, hs * 0.5, ws * 0.5, hs * 0.5], jnp.float32)
    return (warp + 1.0) * scale                               # (B, H, W, 4)


def dkm_parse_output(flow, cert, lowres_cert=None, *, selected_scale=1,
                     tile_h=None, cert_dtype=jnp.bfloat16, vmem_budget=None):
    """Dense equivalent of dkmWrapper.parse_output: (warp, dense_certainty)."""
    dense_cert = dkm_dense_certainty(
        flow, cert, lowres_cert, selected_scale=selected_scale, tile_h=tile_h,
        cert_dtype=cert_dtype, vmem_budget=vmem_budget)
    warp = build_warp(flow)
    return warp, dense_cert


# ------------------------- pure-JAX reference (for checking) -----------------
def _reference(flow, cert, lowres, hs, ws, factor=0.5):
    B, _, H, W = flow.shape
    h16, w16 = lowres.shape[-2:]
    a_h = bilinear_matrix(H, h16)
    a_w = bilinear_matrix(W, w16)
    lr_up = jnp.einsum('hi,bij,wj->bhw', a_h, lowres[:, 0], a_w)
    low_term = factor * lr_up * (lr_up < 0.0)
    c = jax.nn.sigmoid(cert[:, 0] - low_term)
    ys = jnp.linspace(-1 + 1.0 / H, 1 - 1.0 / H, H)
    xs = jnp.linspace(-1 + 1.0 / W, 1 - 1.0 / W, W)
    qy, qx = jnp.meshgrid(ys, xs, indexing='ij')
    fx, fy = flow[:, 0], flow[:, 1]
    wrong = (jnp.abs(fx) > 1.0) | (jnp.abs(fy) > 1.0)
    c = jnp.where(wrong, 0.0, c)
    fxc, fyc = jnp.clip(fx, -1.0, 1.0), jnp.clip(fy, -1.0, 1.0)
    qxb = jnp.broadcast_to(qx, fx.shape)
    qyb = jnp.broadcast_to(qy, fy.shape)
    warp = jnp.stack([qxb, qyb, fxc, fyc], axis=-1)
    kpts = jnp.stack([(qxb + 1) * ws / 2, (qyb + 1) * hs / 2,
                      (fxc + 1) * ws / 2, (fyc + 1) * hs / 2], axis=-1)
    return warp, c, kpts


if __name__ == "__main__":
    key = jax.random.PRNGKey(0)
    B, H, W = 2, 64, 128       # scale-1 flow resolution (W multiple of 128: lane-dense)
    h16, w16 = 4, 8            # scale-16 certainty resolution (H/16, W/16)
    hs, ws = 128, 256          # "original" image size used by to_pixel_coordinates

    k1, k2, k3 = jax.random.split(key, 3)
    # TODO(synk): the wrapped DKM/RoMa backbone (self.model encoder/decoder) is a
    # large external pretrained network; its dense correspondences are synthesized
    # here as deterministic stand-ins for the parse_output hot path.
    flow = jax.random.uniform(k1, (B, 2, H, W), jnp.float32, -1.2, 1.2)
    cert = jax.random.normal(k2, (B, 1, H, W), jnp.float32)
    lowres = jax.random.normal(k3, (B, 1, h16, w16), jnp.float32)

    # ---- scale-1 path (factor = 0.5), bf16 certainty, explicit row tiles -----
    warp, dense_cert = dkm_parse_output(flow, cert, lowres,
                                        selected_scale=1, tile_h=32)
    kpts = to_pixel_coordinates(warp, hs, ws)
    jax.block_until_ready((warp, dense_cert, kpts))

    w_ref, c_ref, k_ref = _reference(flow, cert, lowres, hs, ws, factor=0.5)
    np.testing.assert_allclose(np.asarray(warp), np.asarray(w_ref),
                               rtol=1e-5, atol=1e-5)
    np.testing.assert_allclose(np.asarray(dense_cert.astype(jnp.float32)),
                               np.asarray(c_ref), rtol=0.0, atol=8e-3)  # bf16 output
    np.testing.assert_allclose(np.asarray(kpts), np.asarray(k_ref),
                               rtol=1e-4, atol=1e-4)

    # ---- scale >= 16 path (factor = 0): upsample matmuls skipped, auto tile --
    warp16, cert16 = dkm_parse_output(flow, cert, lowres, selected_scale=16)
    jax.block_until_ready((warp16, cert16))
    w16_ref, c16_ref, _ = _reference(flow, cert, lowres, hs, ws, factor=0.0)
    np.testing.assert_allclose(np.asarray(warp16), np.asarray(w16_ref),
                               rtol=1e-5, atol=1e-5)
    np.testing.assert_allclose(np.asarray(cert16.astype(jnp.float32)),
                               np.asarray(c16_ref), rtol=0.0, atol=8e-3)

    # ---- relaxed divisibility: H not a multiple of tile_h (padded edge tile) -
    Hp, hp16 = 72, 5
    kp1, kp2, kp3 = jax.random.split(jax.random.PRNGKey(1), 3)
    flow_p = jax.random.uniform(kp1, (B, 2, Hp, W), jnp.float32, -1.2, 1.2)
    cert_p = jax.random.normal(kp2, (B, 1, Hp, W), jnp.float32)
    lowres_p = jax.random.normal(kp3, (B, 1, hp16, w16), jnp.float32)
    warp_p, cert_pd = dkm_parse_output(flow_p, cert_p, lowres_p,
                                       selected_scale=1, tile_h=32,
                                       cert_dtype=jnp.float32)
    jax.block_until_ready((warp_p, cert_pd))
    wp_ref, cp_ref, _ = _reference(flow_p, cert_p, lowres_p, hs, ws, factor=0.5)
    np.testing.assert_allclose(np.asarray(warp_p), np.asarray(wp_ref),
                               rtol=1e-5, atol=1e-5)
    np.testing.assert_allclose(np.asarray(cert_pd), np.asarray(cp_ref),
                               rtol=1e-4, atol=1e-4)

    # eval-path confidence thresholding (sample_thresh = 0.15): counts only.
    n_corrs = jnp.sum(dense_cert > 0.15, axis=(1, 2))
    # TODO(synk): torch.multinomial sampling, select_on_pair randperm, boolean
    # compaction kpts[conf > thres], grid_sample interp_sampling and pad_to_same
    # need data-dependent shapes / host RNG; no clean Pallas equivalent.
    jax.block_until_ready(n_corrs)

    print("KERNEL_OK")
</pallas_src>

<mosaic_0001>
module attributes {stable_mosaic.version = 11 : i64} {
  func.func @_cert_kernel(%arg0: i32, %arg1: i32, %arg2: memref<1x2x32x128xf32, #tpu.memory_space<vmem>>, %arg3: memref<1x1x32x128xf32, #tpu.memory_space<vmem>>, %arg4: memref<1x1x4x8xf32, #tpu.memory_space<vmem>>, %arg5: memref<32x4xf32, #tpu.memory_space<vmem>>, %arg6: memref<8x128xf32, #tpu.memory_space<vmem>>, %arg7: memref<1x32x128xbf16, #tpu.memory_space<vmem>>) attributes {dimension_semantics = [#tpu.dimension_semantics<parallel>, #tpu.dimension_semantics<parallel>], iteration_bounds = array<i64: 2, 2>, scalar_prefetch = 0 : i64, scratch_operands = 0 : i64, tpu.core_type = #tpu.core_type<tc>, window_params = [{transform_indices = @transform_0, window_bounds = array<i64: 1, 2, 32, 128>}, {transform_indices = @transform_1, window_bounds = array<i64: 1, 1, 32, 128>}, {transform_indices = @transform_2, window_bounds = array<i64: 1, 1, 4, 8>}, {transform_indices = @transform_3, window_bounds = array<i64: 32, 4>}, {pipeline_mode = #tpu.pipeline_mode<synchronous>, transform_indices = @transform_4, window_bounds = array<i64: 8, 128>}, {transform_indices = @transform_5, window_bounds = array<i64: 1, 32, 128>}]} {
    %c0 = arith.constant 0 : index
    %c0_0 = arith.constant 0 : index
    %c0_1 = arith.constant 0 : index
    %c0_2 = arith.constant 0 : index
    %0 = vector.load %arg2[%c0, %c0_0, %c0_1, %c0_2] : memref<1x2x32x128xf32, #tpu.memory_space<vmem>>, vector<1x1x32x128xf32>
    %1 = vector.shape_cast %0 : vector<1x1x32x128xf32> to vector<32x128xf32>
    %c0_3 = arith.constant 0 : index
    %c1 = arith.constant 1 : index
    %c0_4 = arith.constant 0 : index
    %c0_5 = arith.constant 0 : index
    %2 = vector.load %arg2[%c0_3, %c1, %c0_4, %c0_5] : memref<1x2x32x128xf32, #tpu.memory_space<vmem>>, vector<1x1x32x128xf32>
    %3 = vector.shape_cast %2 : vector<1x1x32x128xf32> to vector<32x128xf32>
    %c0_6 = arith.constant 0 : index
    %c0_7 = arith.constant 0 : index
    %c0_8 = arith.constant 0 : index
    %c0_9 = arith.constant 0 : index
    %4 = vector.load %arg3[%c0_6, %c0_7, %c0_8, %c0_9] : memref<1x1x32x128xf32, #tpu.memory_space<vmem>>, vector<1x1x32x128xf32>
    %5 = vector.shape_cast %4 : vector<1x1x32x128xf32> to vector<32x128xf32>
    %c0_10 = arith.constant 0 : index
    %c0_11 = arith.constant 0 : index
    %c0_12 = arith.constant 0 : index
    %c0_13 = arith.constant 0 : index
    %6 = vector.load %arg4[%c0_10, %c0_11, %c0_12, %c0_13] : memref<1x1x4x8xf32, #tpu.memory_space<vmem>>, vector<1x1x4x8xf32>
    %7 = vector.shape_cast %6 : vector<1x1x4x8xf32> to vector<4x8xf32>
    %c0_14 = arith.constant 0 : index
    %c0_15 = arith.constant 0 : index
    %8 = vector.load %arg5[%c0_14, %c0_15] : memref<32x4xf32, #tpu.memory_space<vmem>>, vector<32x4xf32>
    %cst = arith.constant dense<0.000000e+00> : vector<32x8xf32>
    %9 = tpu.matmul %8, %7, %cst {dimension_numbers = #tpu.dot_dimension_numbers<[1], [0], [0], [1], [0, 0, 1, 1], [], []>} : vector<32x4xf32>, vector<4x8xf32>, vector<32x8xf32> -> vector<32x8xf32>
    %c0_16 = arith.constant 0 : index
    %c0_17 = arith.constant 0 : index
    %10 = vector.load %arg6[%c0_16, %c0_17] : memref<8x128xf32, #tpu.memory_space<vmem>>, vector<8x128xf32>
    %cst_18 = arith.constant dense<0.000000e+00> : vector<32x128xf32>
    %11 = tpu.matmul %9, %10, %cst_18 {dimension_numbers = #tpu.dot_dimension_numbers<[1], [0], [0], [1], [0, 0, 1, 1], [], []>} : vector<32x8xf32>, vector<8x128xf32>, vector<32x128xf32> -> vector<32x128xf32>
    %cst_19 = arith.constant 0.000000e+00 : f32
    %12 = vector.broadcast %cst_19 : f32 to vector<32x128xf32>
    %13 = arith.minimumf %11, %12 : vector<32x128xf32>
    %cst_20 = arith.constant 5.000000e-01 : f32
    %14 = vector.broadcast %cst_20 : f32 to vector<32x128xf32>
    %15 = arith.mulf %14, %13 : vector<32x128xf32>
    %16 = arith.subf %5, %15 : vector<32x128xf32>
    %17 = arith.negf %16 : vector<32x128xf32>
    %18 = math.exp %17 : vector<32x128xf32>
    %cst_21 = arith.constant 1.000000e+00 : f32
    %19 = vector.broadcast %cst_21 : f32 to vector<32x128xf32>
    %20 = arith.addf %19, %18 : vector<32x128xf32>
    %21 = arith.divf %19, %20 : vector<32x128xf32>
    %22 = math.absf %1 : vector<32x128xf32>
    %cst_22 = arith.constant 1.000000e+00 : f32
    %23 = vector.broadcast %cst_22 : f32 to vector<32x128xf32>
    %24 = arith.cmpf ogt, %22, %23 : vector<32x128xf32>
    %25 = math.absf %3 : vector<32x128xf32>
    %cst_23 = arith.constant 1.000000e+00 : f32
    %26 = vector.broadcast %cst_23 : f32 to vector<32x128xf32>
    %27 = arith.cmpf ogt, %25, %26 : vector<32x128xf32>
    %28 = arith.ori %24, %27 : vector<32x128xi1>
    %cst_24 = arith.constant 0.000000e+00 : f32
    %29 = vector.broadcast %cst_24 : f32 to vector<32x128xf32>
    %30 = arith.select %28, %29, %21 : vector<32x128xi1>, vector<32x128xf32>
    %31 = arith.truncf %30 : vector<32x128xf32> to vector<32x128xbf16>
    %c0_25 = arith.constant 0 : index
    %c0_26 = arith.constant 0 : index
    %c0_27 = arith.constant 0 : index
    %32 = vector.load %arg7[%c0_25, %c0_26, %c0_27] : memref<1x32x128xbf16, #tpu.memory_space<vmem>>, vector<1x32x128xbf16>
    %33 = vector.shape_cast %32 : vector<1x32x128xbf16> to vector<32x128xbf16>
    %34 = vector.shape_cast %31 : vector<32x128xbf16> to vector<1x32x128xbf16>
    tpu.vector_store %arg7[%c0_25, %c0_26, %c0_27], %34 {strides = array<i32>} : memref<1x32x128xbf16, #tpu.memory_space<vmem>>, vector<1x32x128xbf16>,
    return
  }
  func.func @transform_0(%arg0: i32, %arg1: i32) -> (i32, i32, i32, i32) {
    %c0_i32 = arith.constant 0 : i32
    %c0_i32_0 = arith.constant 0 : i32
    %c0_i32_1 = arith.constant 0 : i32
    return %arg1, %c0_i32, %arg0, %c0_i32_0 : i32, i32, i32, i32
  }
  func.func @transform_1(%arg0: i32, %arg1: i32) -> (i32, i32, i32, i32) {
    %c0_i32 = arith.constant 0 : i32
    %c0_i32_0 = arith.constant 0 : i32
    %c0_i32_1 = arith.constant 0 : i32
    return %arg1, %c0_i32, %arg0, %c0_i32_0 : i32, i32, i32, i32
  }
  func.func @transform_2(%arg0: i32, %arg1: i32) -> (i32, i32, i32, i32) {
    %c0_i32 = arith.constant 0 : i32
    %c0_i32_0 = arith.constant 0 : i32
    %c0_i32_1 = arith.constant 0 : i32
    %c0_i32_2 = arith.constant 0 : i32
    return %arg1, %c0_i32, %c0_i32_0, %c0_i32_1 : i32, i32, i32, i32
  }
  func.func @transform_3(%arg0: i32, %arg1: i32) -> (i32, i32) {
    %c0_i32 = arith.constant 0 : i32
    %c0_i32_0 = arith.constant 0 : i32
    return %arg0, %c0_i32 : i32, i32
  }
  func.func @transform_4(%arg0: i32, %arg1: i32) -> (i32, i32) {
    %c0_i32 = arith.constant 0 : i32
    %c0_i32_0 = arith.constant 0 : i32
    %c0_i32_1 = arith.constant 0 : i32
    return %c0_i32, %c0_i32_0 : i32, i32
  }
  func.func @transform_5(%arg0: i32, %arg1: i32) -> (i32, i32, i32) {
    %c0_i32 = arith.constant 0 : i32
    %c0_i32_0 = arith.constant 0 : i32
    return %arg1, %arg0, %c0_i32 : i32, i32, i32
  }
}

</mosaic_0001>

<llo_original>
// kernel: tpu_custom_call.1
$region0: #{tpu_custom_call.1}
  #allocation0 [shape = 'u32[]', space=smem, size = 0x4, offset = 0x4, fixed_abs, tag = 'smem constant byte address 0x4 - core index']
  #allocation1 [shape = 'u32[144,128]{1,0:T(1,128)}', space=vmem, size = 0x12000, scoped, tag = 'internal scratch']
  #allocation8 [shape = 's32[]', space=sflag, size = 0x4, offset = 0, fixed_abs, tag = 'sflag constant byte address 0x0 - dummy sync flag']
  %s0 = inlined_call_operand.hbm [shape: f32[2,2,64,128], index: 0, kind: input, shape index: {}]
  %s1 = inlined_call_operand.hbm [shape: f32[2,1,64,128], index: 1, kind: input, shape index: {}]
  %s2 = inlined_call_operand.vmem [shape: f32[2,1,4,8], index: 2, kind: input, shape index: {}]
  %s3 = inlined_call_operand.vmem [shape: f32[64,4], index: 3, kind: input, shape index: {}]
  %s4 = inlined_call_operand.vmem [shape: f32[8,128], index: 4, kind: input, shape index: {}]
  %s5 = inlined_call_operand.hbm [shape: bf16[2,64,128], index: 5, kind: output, shape index: {}]
  %s6 = sld [smem:[#allocation0]]
  $region61: #{tpu_custom_call.1} parent=0
    _
  %s8 = ssub.s32 1, %s6
  %s9 = scalar_select 0, %s8, %s6
  $region1: #{tpu_custom_call.1} parent=0
    #allocation2 [shape = 'u8[65536]{0}', space=vmem, size = 0x10000, scoped, tag = 'input window, operand 0']
    #allocation3 [shape = 's32[2]{0}', space=sflag, size = 0x8, scoped, tag = 'scoped memory for tpu_custom_call.1']
    #allocation4 [shape = 's32[2]{0}', space=sflag, size = 0x8, scoped, tag = 'scoped memory for tpu_custom_call.1']
    #allocation5 [shape = 'u8[32768]{0}', space=vmem, size = 0x8000, scoped, tag = 'input window, operand 1']
    #allocation6 [shape = 's32[2]{0}', space=sflag, size = 0x8, scoped, tag = 'scoped memory for tpu_custom_call.1']
    #allocation7 [shape = 'u8[16384]{0}', space=vmem, size = 0x4000, scoped, tag = 'output window, operand 0']
    %10 = vsyncpa [#allocation3], 0
    %s11 = scalar_lea.sflag [#allocation3], 1
    %12 = vsyncpa %s11, 0
    %13 = vsyncpa [#allocation6], 0
    %s14 = scalar_lea.sflag [#allocation6], 1
    %15 = vsyncpa %s14, 0
    %16 = vsyncpa [#allocation4], 0
    %s17 = scalar_lea.sflag [#allocation4], 1
    %18 = vsyncpa %s17, 0
    loop: start=0, step=1, limit=6
    $region2: #{tpu_custom_call.1} parent=1 // loop_pre_header
      _
    $region3: #{tpu_custom_call.1} parent=1 // loop_header
      %s20 = sphi 0, %s24
      %p21 = scmp.ge.s32.totalorder %s20, 6
      %s27 = sphi 0, %s39
      %s28 = sphi 0, %s35
      %s29 = sphi 0, %s27
      %s30 = sphi 0, %s28
      %s31 = sphi 0, %s29
      %s32 = sphi 0, %s30
      %s44 = sphi 0, %s46
      %s47 = sphi 0, %s44
      %s48 = sphi 0, %s47
      %s64 = sphi 0, %s48
      %s72 = sphi 0, %s74
      %s75 = sphi 0, %s72
      %s76 = sphi 0, %s75
      %s92 = sphi 0, %s76
      %s98 = sphi 0, %s100
      %s101 = sphi 0, %s98
      %s102 = sphi 0, %s101
      %s118 = sphi 0, %s102
      %s124 = sphi 0, %s126
      %s127 = sphi 0, %s124
      %s128 = sphi 0, %s127
      %s144 = sphi 0, %s128
      %s148 = sphi 0, %s148
      %s150 = sphi 0, %s148
      %s151 = sphi 0, %s150
      %s165 = sphi 0, %s151
      %s173 = sphi 0, %s175
      %s176 = sphi 0, %s173
      %s177 = sphi 0, %s176
      %s193 = sphi 0, %s177
    $region4: #{tpu_custom_call.1} parent=1 // loop_header_branch
      %23 = sbr.rel (%p21) target = $region8
    $region5: #{tpu_custom_call.1} parent=1 // loop_body
      %s25 = ssub.s32 %s20, 1
      %s26 = ssub.s32 %s20, 2
      %s33 = sadd.s32 1, %s28
      %p34 = scmp.ge.s32.totalorder %s33, 2
      %s35 = scalar_select %p34, 0, %s33
      %s36 = sadd.s32 1, %s27
      %s37 = scalar_select %p34, %s36, %s27
      %p38 = scmp.ge.s32.totalorder %s37, 2
      %s39 = scalar_select %p38, 0, %s37
      %s40 = ssub.s32 %s28, %s35
      %s41 = ssub.s32 %s27, %s39
      %s42 = sor.u32 %s40, %s41
      %p43 = scmp.eq.s32.totalorder %s42, 0
      %s45 = sadd.s32 %s44, 1
      %s46 = scalar_select %p43, %s44, %s45
      %p49 = pneg %p43
      %p50 = scmp.eq.s32.totalorder %s20, 3
      %p51 = por %p49, %p50
      %p52 = scmp.ne.s32.totalorder %s44, %s47
      %p53 = scmp.eq.s32.totalorder %s20, 0
      %p54 = por %p52, %p53
      %p55 = scmp.ne.s32.totalorder %s44, %s47
      %p56 = scmp.eq.s32.totalorder %s25, 3
      %p57 = por %p55, %p56
      %p58 = scmp.ne.s32.totalorder %s47, %s48
      %p59 = scmp.eq.s32.totalorder %s25, 0
      %p60 = por %p58, %p59
      %p61 = scmp.ne.s32.totalorder %s47, %s48
      %p62 = scmp.eq.s32.totalorder %s26, 3
      %p63 = por %p61, %p62
      %p65 = scmp.ne.s32.totalorder %s48, %s64
      %p66 = scmp.eq.s32.totalorder %s26, 0
      %p67 = por %p65, %p66
      %s68 = ssub.s32 %s28, %s35
      %s69 = ssub.s32 %s27, %s39
      %s70 = sor.u32 %s68, %s69
      %p71 = scmp.eq.s32.totalorder %s70, 0
      %s73 = sadd.s32 %s72, 1
      %s74 = scalar_select %p71, %s72, %s73
      %p77 = pneg %p71
      %p78 = scmp.eq.s32.totalorder %s20, 3
      %p79 = por %p77, %p78
      %p80 = scmp.ne.s32.totalorder %s72, %s75
      %p81 = scmp.eq.s32.totalorder %s20, 0
      %p82 = por %p80, %p81
      %p83 = scmp.ne.s32.totalorder %s72, %s75
      %p84 = scmp.eq.s32.totalorder %s25, 3
      %p85 = por %p83, %p84
      %p86 = scmp.ne.s32.totalorder %s75, %s76
      %p87 = scmp.eq.s32.totalorder %s25, 0
      %p88 = por %p86, %p87
      %p89 = scmp.ne.s32.totalorder %s75, %s76
      %p90 = scmp.eq.s32.totalorder %s26, 3
      %p91 = por %p89, %p90
      %p93 = scmp.ne.s32.totalorder %s76, %s92
      %p94 = scmp.eq.s32.totalorder %s26, 0
      %p95 = por %p93, %p94
      %s96 = ssub.s32 %s28, %s35
      %p97 = scmp.eq.s32.totalorder %s96, 0
      %s99 = sadd.s32 %s98, 1
      %s100 = scalar_select %p97, %s98, %s99
      %p103 = pneg %p97
      %p104 = scmp.eq.s32.totalorder %s20, 3
      %p105 = por %p103, %p104
      %p106 = scmp.ne.s32.totalorder %s98, %s101
      %p107 = scmp.eq.s32.totalorder %s20, 0
      %p108 = por %p106, %p107
      %p109 = scmp.ne.s32.totalorder %s98, %s101
      %p110 = scmp.eq.s32.totalorder %s25, 3
      %p111 = por %p109, %p110
      %p112 = scmp.ne.s32.totalorder %s101, %s102
      %p113 = scmp.eq.s32.totalorder %s25, 0
      %p114 = por %p112, %p113
      %p115 = scmp.ne.s32.totalorder %s101, %s102
      %p116 = scmp.eq.s32.totalorder %s26, 3
      %p117 = por %p115, %p116
      %p119 = scmp.ne.s32.totalorder %s102, %s118
      %p120 = scmp.eq.s32.totalorder %s26, 0
      %p121 = por %p119, %p120
      %s122 = ssub.s32 %s27, %s39
      %p123 = scmp.eq.s32.totalorder %s122, 0
      %s125 = sadd.s32 %s124, 1
      %s126 = scalar_select %p123, %s124, %s125
      %p129 = pneg %p123
      %p130 = scmp.eq.s32.totalorder %s20, 3
      %p131 = por %p129, %p130
      %p132 = scmp.ne.s32.totalorder %s124, %s127
      %p133 = scmp.eq.s32.totalorder %s20, 0
      %p134 = por %p132, %p133
      %p135 = scmp.ne.s32.totalorder %s124, %s127
      %p136 = scmp.eq.s32.totalorder %s25, 3
      %p137 = por %p135, %p136
      %p138 = scmp.ne.s32.totalorder %s127, %s128
      %p139 = scmp.eq.s32.totalorder %s25, 0
      %p140 = por %p138, %p139
      %p141 = scmp.ne.s32.totalorder %s127, %s128
      %p142 = scmp.eq.s32.totalorder %s26, 3
      %p143 = por %p141, %p142
      %p145 = scmp.ne.s32.totalorder %s128, %s144
      %p146 = scmp.eq.s32.totalorder %s26, 0
      %p147 = por %p145, %p146
      %s149 = sadd.s32 %s148, 1
      %p152 = scmp.eq.s32.totalorder %s20, 3
      %p153 = scmp.ne.s32.totalorder %s148, %s150
      %p154 = scmp.eq.s32.totalorder %s20, 0
      %p155 = por %p153, %p154
      %p156 = scmp.ne.s32.totalorder %s148, %s150
      %p157 = scmp.eq.s32.totalorder %s25, 3
      %p158 = por %p156, %p157
      %p159 = scmp.ne.s32.totalorder %s150, %s151
      %p160 = scmp.eq.s32.totalorder %s25, 0
      %p161 = por %p159, %p160
      %p162 = scmp.ne.s32.totalorder %s150, %s151
      %p163 = scmp.eq.s32.totalorder %s26, 3
      %p164 = por %p162, %p163
      %p166 = scmp.ne.s32.totalorder %s151, %s165
      %p167 = scmp.eq.s32.totalorder %s26, 0
      %p168 = por %p166, %p167
      %s169 = ssub.s32 %s28, %s35
      %s170 = ssub.s32 %s27, %s39
      %s171 = sor.u32 %s169, %s170
      %p172 = scmp.eq.s32.totalorder %s171, 0
      %s174 = sadd.s32 %s173, 1
      %s175 = scalar_select %p172, %s173, %s174
      %p178 = pneg %p172
      %p179 = scmp.eq.s32.totalorder %s20, 3
      %p180 = por %p178, %p179
      %p181 = scmp.ne.s32.totalorder %s173, %s176
      %p182 = scmp.eq.s32.totalorder %s20, 0
      %p183 = por %p181, %p182
      %p184 = scmp.ne.s32.totalorder %s173, %s176
      %p185 = scmp.eq.s32.totalorder %s25, 3
      %p186 = por %p184, %p185
      %p187 = scmp.ne.s32.totalorder %s176, %s177
      %p188 = scmp.eq.s32.totalorder %s25, 0
      %p189 = por %p187, %p188
      %p190 = scmp.ne.s32.totalorder %s176, %s177
      %p191 = scmp.eq.s32.totalorder %s26, 3
      %p192 = por %p190, %p191
      %p194 = scmp.ne.s32.totalorder %s177, %s193
      %p195 = scmp.eq.s32.totalorder %s26, 0
      %p196 = por %p194, %p195
      %p197 = scmp.le.s32.totalorder 1, %s20
      %p198 = scmp.lt.s32.totalorder %s20, 5
      %p199 = pnand %p197, %p198
      %p200 = pneg %p199
      // Predicated region
      $region9: #{tpu_custom_call.1} parent=5 // pred_check
        _
      $region10: #{tpu_custom_call.1} parent=5 // pred_check_branch
        %202 = sbr.rel (%p199) target = $region12
      $region11: #{tpu_custom_call.1} parent=5 // pred_region
        %s203 = ssub.s32 %s20, 1
        // Predicated region
        $region13: #{tpu_custom_call.1} parent=11 // pred_check
          %p204 = pneg %p161
        $region14: #{tpu_custom_call.1} parent=11 // pred_check_branch
          %206 = sbr.rel (%p204) target = $region16
        $region15: #{tpu_custom_call.1} parent=11 // pred_region
          _
        $region16: #{tpu_custom_call.1} parent=11 // pred_fallthru
          _
      $region12: #{tpu_custom_call.1} parent=5 // pred_fallthru
        _
      %p207 = scmp.lt.s32.totalorder %s20, 4
      // Predicated region
      $region17: #{tpu_custom_call.1} parent=5 // pred_check
        %p208 = pneg %p207
      $region18: #{tpu_custom_call.1} parent=5 // pred_check_branch
        %210 = sbr.rel (%p208) target = $region20
      $region19: #{tpu_custom_call.1} parent=5 // pred_region
        // Predicated region
        $region21: #{tpu_custom_call.1} parent=19 // pred_check
          %p211 = pneg %p54
        $region22: #{tpu_custom_call.1} parent=19 // pred_check_branch
          %213 = sbr.rel (%p211) target = $region24
        $region23: #{tpu_custom_call.1} parent=19 // pred_region
          #allocation9 [shape = 'u32[6]{0}', space=smem, size = 0x18, scoped, tag = 'DMA stride descriptor']
          %s214 = sand.u32 %s44, 1
          %s215 = scalar_lea.sflag [#allocation3], %s214
          %s216 = sand.u32 %s44, 1
          %s217 = smul.addr %s216, 64
          %s218 = scalar_lea.vmem [#allocation2], %s217
          %s219 = smul.u32 4, %s27
          %s221 = ssub.s32 1024, 1024
          %222 = vsyncadd %s215, %s221
          %s223 = smul.addr %s28, 16
          %s224 = sadd.s32 %s219, %s223
          %s225 = smul.addr %s224, 128
          %s226 = scalar_lea.hbm %s0, %s225
          %s228 = sshll.u32 1, 14
          %s229 = sxor.u32 4294967295, %s228
          %s231 = sld [smem:[#allocation0]]
          %s232 = sadd.s32 2, %s231
          %s234 = sshll.u32 7, 26
          %s235 = sxor.u32 4294967295, %s234
          %s236 = sand.u32 0, %s235
          %s237 = sshll.u32 %s232, 26
          %s238 = sor.u32 %s236, %s237
          %s239 = sshll.u32 %s218, 4
          %s240 = int_to_ptr.vmem [resolvable:$true] %s239
          %246 = sst [smem:[#allocation9]] 1024
          %s247 = scalar_lea.smem [#allocation9], 1
          %248 = sst [smem:[%s247]] 512
          %s249 = scalar_lea.smem [#allocation9], 2
          %250 = sst [smem:[%s249]] 4
          %s251 = scalar_lea.smem [#allocation9], 3
          %252 = sst [smem:[%s251]] 128
          %s253 = scalar_lea.smem [#allocation9], 4
          %254 = sst [smem:[%s253]] 128
          %s255 = scalar_lea.smem [#allocation9], 5
          %256 = sst [smem:[%s255]] 8
          %258 = dma.general %s226, 1024, %s240, %s215, [#allocation8], [#allocation9], %s238, 0
        $region24: #{tpu_custom_call.1} parent=19 // pred_fallthru
          _
        // Predicated region
        $region25: #{tpu_custom_call.1} parent=19 // pred_check
          %p259 = pneg %p82
        $region26: #{tpu_custom_call.1} parent=19 // pred_check_branch
          %261 = sbr.rel (%p259) target = $region28
        $region27: #{tpu_custom_call.1} parent=19 // pred_region
          %s262 = sand.u32 %s72, 1
          %s263 = scalar_lea.sflag [#allocation6], %s262
          %s264 = sand.u32 %s72, 1
          %s265 = smul.addr %s264, 32
          %s266 = scalar_lea.vmem [#allocation5], %s265
          %s267 = smul.u32 4, %s27
          %s269 = ssub.s32 512, 512
          %270 = vsyncadd %s263, %s269
          %s271 = smul.addr %s28, 8
          %s272 = sadd.s32 %s267, %s271
          %s273 = smul.addr %s272, 128
          %s274 = scalar_lea.hbm %s1, %s273
          %s275 = sshll.u32 %s266, 4
          %s276 = int_to_ptr.vmem [resolvable:$true] %s275
          %281 = dma.hbm_to_vmem [thread:$0]  %s274, 512, %s276, %s263, 128, 128, 8
        $region28: #{tpu_custom_call.1} parent=19 // pred_fallthru
          _
        // Predicated region
        $region29: #{tpu_custom_call.1} parent=19 // pred_check
          %p282 = pneg %p108
        $region30: #{tpu_custom_call.1} parent=19 // pred_check_branch
          %284 = sbr.rel (%p282) target = $region32
        $region31: #{tpu_custom_call.1} parent=19 // pred_region
          %p285 = scmp.lt.s32.totalorder %s28, 1
          %s286 = scalar_select %p285, %s28, 1
          %s287 = smul.addr %s286, 4
          %s288 = scalar_lea.vmem %s2, %s287
        $region32: #{tpu_custom_call.1} parent=19 // pred_fallthru
          _
        // Predicated region
        $region33: #{tpu_custom_call.1} parent=19 // pred_check
          %p289 = pneg %p134
        $region34: #{tpu_custom_call.1} parent=19 // pred_check_branch
          %291 = sbr.rel (%p289) target = $region36
        $region35: #{tpu_custom_call.1} parent=19 // pred_region
          %s292 = smul.u32 4, %s27
          %p293 = scmp.lt.s32.totalorder %s292, 7
          %s294 = scalar_select %p293, %s292, 7
          %s295 = smul.addr %s294, 8
          %s296 = scalar_lea.vmem %s3, %s295
          %s297 = smul.u32 4, %s27
        $region36: #{tpu_custom_call.1} parent=19 // pred_fallthru
          _
      $region20: #{tpu_custom_call.1} parent=5 // pred_fallthru
        _
      %p298 = scmp.le.s32.totalorder 1, %s20
      %p299 = scmp.lt.s32.totalorder %s20, 5
      %p300 = pnand %p298, %p299
      %p301 = pneg %p300
      // Predicated region
      $region37: #{tpu_custom_call.1} parent=5 // pred_check
        _
      $region38: #{tpu_custom_call.1} parent=5 // pred_check_branch
        %303 = sbr.rel (%p300) target = $region40
      $region39: #{tpu_custom_call.1} parent=5 // pred_region
        %s304 = ssub.s32 %s20, 1
        %s305 = sand.u32 %s47, 1
        %s306 = scalar_lea.sflag [#allocation3], %s305
        %s307 = sand.u32 %s47, 1
        %s308 = smul.addr %s307, 64
        %s309 = scalar_lea.vmem [#allocation2], %s308
        // Predicated region
        $region41: #{tpu_custom_call.1} parent=39 // pred_check
          %p310 = pneg %p60
        $region42: #{tpu_custom_call.1} parent=39 // pred_check_branch
          %312 = sbr.rel (%p310) target = $region44
        $region43: #{tpu_custom_call.1} parent=39 // pred_region
          %313 = dma.done %s306, 1024
        $region44: #{tpu_custom_call.1} parent=39 // pred_fallthru
          _
        %s314 = sand.u32 %s75, 1
        %s315 = scalar_lea.sflag [#allocation6], %s314
        %s316 = sand.u32 %s75, 1
        %s317 = smul.addr %s316, 32
        %s318 = scalar_lea.vmem [#allocation5], %s317
        // Predicated region
        $region45: #{tpu_custom_call.1} parent=39 // pred_check
          %p319 = pneg %p88
        $region46: #{tpu_custom_call.1} parent=39 // pred_check_branch
          %321 = sbr.rel (%p319) target = $region48
        $region47: #{tpu_custom_call.1} parent=39 // pred_region
          %322 = dma.done %s315, 512
        $region48: #{tpu_custom_call.1} parent=39 // pred_fallthru
          _
        %s323 = sand.u32 %s47, 1
        %s324 = scalar_lea.sflag [#allocation3], %s323
        %s325 = sand.u32 %s47, 1
        %s326 = smul.addr %s325, 64
        %s327 = scalar_lea.vmem [#allocation2], %s326
        %p328 = pneg %p60
        %p329 = pneg %p57
        %s330 = sand.u32 %s75, 1
        %s331 = scalar_lea.sflag [#allocation6], %s330
        %s332 = sand.u32 %s75, 1
        %s333 = smul.addr %s332, 32
        %s334 = scalar_lea.vmem [#allocation5], %s333
        %p335 = pneg %p88
        %p336 = pneg %p85
        %p337 = scmp.lt.s32.totalorder %s30, 1
        %s338 = scalar_select %p337, %s30, 1
        %s339 = smul.addr %s338, 4
        %s340 = scalar_lea.vmem %s2, %s339
        %p341 = pneg %p114
        %p342 = pneg %p111
        %s343 = smul.u32 4, %s29
        %p344 = scmp.lt.s32.totalorder %s343, 7
        %s345 = scalar_select %p344, %s343, 7
        %s346 = smul.addr %s345, 8
        %s347 = scalar_lea.vmem %s3, %s346
        %p348 = pneg %p140
        %p349 = pneg %p137
        %p350 = pneg %p161
        %p351 = pneg %p158
        %p352 = pneg %p189
        %p353 = pneg %p186
        %s354 = sand.u32 %s176, 1
        %s355 = scalar_lea.sflag [#allocation4], %s354
        %s356 = sand.u32 %s176, 1
        %s357 = smul.addr %s356, 16
        %s358 = scalar_lea.vmem [#allocation7], %s357
        %s359 = smul.u32 4, %s29
        %s360 = smul.u32 4, %s29
        %p361 = scmp.lt.s32.totalorder %s30, 1
        %s362 = scalar_select %p361, %s30, 1
        %s363 = smul.addr %s362, 4
        %s364 = scalar_lea.vmem %s2, %s363
        %s365 = smul.u32 4, %s29
        %p366 = scmp.lt.s32.totalorder %s365, 7
        %s367 = scalar_select %p366, %s365, 7
        %s368 = smul.addr %s367, 8
        %s369 = scalar_lea.vmem %s3, %s368
        %s370 = smul.u32 4, %s29
        %s371 = smul.u32 4, %s29
        %v372 = vld [vmem:[%s309] sm:$0xff]
        %v373 = vld [vmem:[%s309 + $0x8] sm:$0xff]
        %v374 = vld [vmem:[%s309 + $0x10] sm:$0xff]
        %v375 = vld [vmem:[%s309 + $0x18] sm:$0xff]
        %s376 = scalar_lea.vmem %s309, 32 [#allocation2]
        %v377 = vld [vmem:[%s376] sm:$0xff]
        %v378 = vld [vmem:[%s376 + $0x8] sm:$0xff]
        %v379 = vld [vmem:[%s376 + $0x10] sm:$0xff]
        %v380 = vld [vmem:[%s376 + $0x18] sm:$0xff]
        %v381 = vld [vmem:[%s318] sm:$0xff]
        %v382 = vld [vmem:[%s318 + $0x8] sm:$0xff]
        %v383 = vld [vmem:[%s318 + $0x10] sm:$0xff]
        %v384 = vld [vmem:[%s318 + $0x18] sm:$0xff]
        %v385 = vld [vmem:[%s364] sm:$0xf]
        %v386 = vld [vmem:[%s369] sm:$0xff]
        %v387 = vld [vmem:[%s369 + $0x8] sm:$0xff]
        %v388 = vld [vmem:[%s369 + $0x10] sm:$0xff]
        %v389 = vld [vmem:[%s369 + $0x18] sm:$0xff]
        %vm390 = vcmask 31744
        %v392 = vsel %vm390, %v386, 0
        %v395 = vsel %vm390, %v387, 0
        %v398 = vsel %vm390, %v388, 0
        %v401 = vsel %vm390, %v389, 0
        %vm403 = vcmask 1043456
        %v405 = vsel %vm403, %v385, 0
        %407 = vmatprep.subr.mxu0 0.0
        %408 = vmatpush1.msra.mxu0 %v405
        %409 = vmatprep.subr.mxu0 0.0
        %410 = vmatpush1.msra.mxu0 0.0
        %411 = vmatprep.subr.mxu0 0.0
        %412 = vmatpush1.msra.mxu0 0.0
        %413 = vmatprep.subr.mxu0 0.0
        %414 = vmatpush1.msra.mxu0 0.0
        %415 = vmatprep.subr.mxu0 0.0
        %416 = vmatpush1.msra.mxu0 0.0
        %417 = vmatprep.subr.mxu0 0.0
        %418 = vmatpush1.msra.mxu0 0.0
        %419 = vmatprep.subr.mxu0 0.0
        %420 = vmatpush1.msra.mxu0 0.0
        %421 = vmatprep.subr.mxu0 0.0
        %422 = vmatpush1.msra.mxu0 0.0
        %423 = vmatprep.subr.mxu0 0.0
        %424 = vmatpush1.msra.mxu0 0.0
        %425 = vmatprep.subr.mxu0 0.0
        %426 = vmatpush1.msra.mxu0 0.0
        %427 = vmatprep.subr.mxu0 0.0
        %428 = vmatpush1.msra.mxu0 0.0
        %429 = vmatprep.subr.mxu0 0.0
        %430 = vmatpush1.msra.mxu0 0.0
        %431 = vmatprep.subr.mxu0 0.0
        %432 = vmatpush1.msra.mxu0 0.0
        %433 = vmatprep.subr.mxu0 0.0
        %434 = vmatpush1.msra.mxu0 0.0
        %435 = vmatprep.subr.mxu0 0.0
        %436 = vmatpush1.msra.mxu0 0.0
        %437 = vmatprep.subr.mxu0 0.0
        %438 = vmatpush1.msra.mxu0 0.0
        %439 = vmatprep.subr.mxu0 0.0
        %440 = vmatpush1.msra.mxu0 0.0
        %441 = vmatprep.subr.mxu0 0.0
        %442 = vmatpush1.msra.mxu0 0.0
        %443 = vmatprep.subr.mxu0 0.0
        %444 = vmatpush1.msra.mxu0 0.0
        %445 = vmatprep.subr.mxu0 0.0
        %446 = vmatpush1.msra.mxu0 0.0
        %447 = vmatprep.subr.mxu0 0.0
        %448 = vmatpush1.msra.mxu0 0.0
        %449 = vmatprep.subr.mxu0 0.0
        %450 = vmatpush1.msra.mxu0 0.0
        %451 = vmatprep.subr.mxu0 0.0
        %452 = vmatpush1.msra.mxu0 0.0
        %453 = vmatprep.subr.mxu0 0.0
        %454 = vmatpush1.msra.mxu0 0.0
        %455 = vmatprep.subr.mxu0 0.0
        %456 = vmatpush1.msra.mxu0 0.0
        %457 = vmatprep.subr.mxu0 0.0
        %458 = vmatpush1.msra.mxu0 0.0
        %459 = vmatprep.subr.mxu0 0.0
        %460 = vmatpush1.msra.mxu0 0.0
        %461 = vmatprep.subr.mxu0 0.0
        %462 = vmatpush1.msra.mxu0 0.0
        %463 = vmatprep.subr.mxu0 0.0
        %464 = vmatpush1.msra.mxu0 0.0
        %465 = vmatprep.subr.mxu0 0.0
        %466 = vmatpush1.msra.mxu0 0.0
        %467 = vmatprep.subr.mxu0 0.0
        %468 = vmatpush1.msra.mxu0 0.0
        %469 = vmatprep.subr.mxu0 0.0
        %470 = vmatpush1.msra.mxu0 0.0
        %471 = vmatprep.mubr.f32.mxu0 0.0
        %472 = vmatmul.mubr.f32.gmra.mrb[0].mxu0 %v392
        %v473 = vpop.f32.mrb[0].mxu0
        %v474 = vadd.f32 0.0, %v473
        %v475 = vpop.f32.mrb[0].mxu0
        %476 = vmatprep.mubr.f32.mxu0 0.0
        %477 = vmatmul.mubr.f32.gmra.mrb[0].mxu0 %v395
        %v478 = vpop.f32.mrb[0].mxu0
        %v479 = vadd.f32 0.0, %v478
        %v480 = vpop.f32.mrb[0].mxu0
        %481 = vmatprep.mubr.f32.mxu0 0.0
        %482 = vmatmul.mubr.f32.gmra.mrb[0].mxu0 %v398
        %v483 = vpop.f32.mrb[0].mxu0
        %v484 = vadd.f32 0.0, %v483
        %v485 = vpop.f32.mrb[0].mxu0
        %486 = vmatprep.mubr.f32.mxu0 0.0
        %487 = vmatmul.mubr.f32.gmra.mrb[0].mxu0 %v401
        %v488 = vpop.f32.mrb[0].mxu0
        %v489 = vadd.f32 0.0, %v488
        %v490 = vpop.f32.mrb[0].mxu0
        %491 = vdwg.mxu0
        %v492 = vld [vmem:[%s4] sm:$0xff]
        %vm493 = vcmask 64512
        %v495 = vsel %vm493, %v474, 0
        %v498 = vsel %vm493, %v479, 0
        %v501 = vsel %vm493, %v484, 0
        %v504 = vsel %vm493, %v489, 0
        %506 = vmatprep.subr.mxu0 0.0
        %507 = vmatpush1.msra.mxu0 %v492
        %508 = vmatprep.subr.mxu0 0.0
        %509 = vmatpush1.msra.mxu0 0.0
        %510 = vmatprep.subr.mxu0 0.0
        %511 = vmatpush1.msra.mxu0 0.0
        %512 = vmatprep.subr.mxu0 0.0
        %513 = vmatpush1.msra.mxu0 0.0
        %514 = vmatprep.subr.mxu0 0.0
        %515 = vmatpush1.msra.mxu0 0.0
        %516 = vmatprep.subr.mxu0 0.0
        %517 = vmatpush1.msra.mxu0 0.0
        %518 = vmatprep.subr.mxu0 0.0
        %519 = vmatpush1.msra.mxu0 0.0
        %520 = vmatprep.subr.mxu0 0.0
        %521 = vmatpush1.msra.mxu0 0.0
        %522 = vmatprep.subr.mxu0 0.0
        %523 = vmatpush1.msra.mxu0 0.0
        %524 = vmatprep.subr.mxu0 0.0
        %525 = vmatpush1.msra.mxu0 0.0
        %526 = vmatprep.subr.mxu0 0.0
        %527 = vmatpush1.msra.mxu0 0.0
        %528 = vmatprep.subr.mxu0 0.0
        %529 = vmatpush1.msra.mxu0 0.0
        %530 = vmatprep.subr.mxu0 0.0
        %531 = vmatpush1.msra.mxu0 0.0
        %532 = vmatprep.subr.mxu0 0.0
        %533 = vmatpush1.msra.mxu0 0.0
        %534 = vmatprep.subr.mxu0 0.0
        %535 = vmatpush1.msra.mxu0 0.0
        %536 = vmatprep.subr.mxu0 0.0
        %537 = vmatpush1.msra.mxu0 0.0
        %538 = vmatprep.subr.mxu0 0.0
        %539 = vmatpush1.msra.mxu0 0.0
        %540 = vmatprep.subr.mxu0 0.0
        %541 = vmatpush1.msra.mxu0 0.0
        %542 = vmatprep.subr.mxu0 0.0
        %543 = vmatpush1.msra.mxu0 0.0
        %544 = vmatprep.subr.mxu0 0.0
        %545 = vmatpush1.msra.mxu0 0.0
        %546 = vmatprep.subr.mxu0 0.0
        %547 = vmatpush1.msra.mxu0 0.0
        %548 = vmatprep.subr.mxu0 0.0
        %549 = vmatpush1.msra.mxu0 0.0
        %550 = vmatprep.subr.mxu0 0.0
        %551 = vmatpush1.msra.mxu0 0.0
        %552 = vmatprep.subr.mxu0 0.0
        %553 = vmatpush1.msra.mxu0 0.0
        %554 = vmatprep.subr.mxu0 0.0
        %555 = vmatpush1.msra.mxu0 0.0
        %556 = vmatprep.subr.mxu0 0.0
        %557 = vmatpush1.msra.mxu0 0.0
        %558 = vmatprep.subr.mxu0 0.0
        %559 = vmatpush1.msra.mxu0 0.0
        %560 = vmatprep.subr.mxu0 0.0
        %561 = vmatpush1.msra.mxu0 0.0
        %562 = vmatprep.subr.mxu0 0.0
        %563 = vmatpush1.msra.mxu0 0.0
        %564 = vmatprep.subr.mxu0 0.0
        %565 = vmatpush1.msra.mxu0 0.0
        %566 = vmatprep.subr.mxu0 0.0
        %567 = vmatpush1.msra.mxu0 0.0
        %568 = vmatprep.subr.mxu0 0.0
        %569 = vmatpush1.msra.mxu0 0.0
        %570 = vmatprep.mubr.f32.mxu0 0.0
        %571 = vmatmul.mubr.f32.gmra.mrb[0].mxu0 %v495
        %v572 = vpop.f32.mrb[0].mxu0
        %v573 = vadd.f32 0.0, %v572
        %v574 = vpop.f32.mrb[0].mxu0
        %575 = vmatprep.mubr.f32.mxu0 0.0
        %576 = vmatmul.mubr.f32.gmra.mrb[0].mxu0 %v498
        %v577 = vpop.f32.mrb[0].mxu0
        %v578 = vadd.f32 0.0, %v577
        %v579 = vpop.f32.mrb[0].mxu0
        %580 = vmatprep.mubr.f32.mxu0 0.0
        %581 = vmatmul.mubr.f32.gmra.mrb[0].mxu0 %v501
        %v582 = vpop.f32.mrb[0].mxu0
        %v583 = vadd.f32 0.0, %v582
        %v584 = vpop.f32.mrb[0].mxu0
        %585 = vmatprep.mubr.f32.mxu0 0.0
        %586 = vmatmul.mubr.f32.gmra.mrb[0].mxu0 %v504
        %v587 = vpop.f32.mrb[0].mxu0
        %v588 = vadd.f32 0.0, %v587
        %v589 = vpop.f32.mrb[0].mxu0
        %590 = vdwg.mxu0
        %v591 = vmin.f32 %v573, 0.0
        %v592 = vmin.f32 %v578, 0.0
        %v593 = vmin.f32 %v583, 0.0
        %v594 = vmin.f32 %v588, 0.0
        %v595 = vmul.f32 %v591, 0.5
        %v596 = vmul.f32 %v592, 0.5
        %v597 = vmul.f32 %v593, 0.5
        %v598 = vmul.f32 %v594, 0.5
        %v599 = vsub.f32 %v381, %v595
        %v600 = vsub.f32 %v382, %v596
        %v601 = vsub.f32 %v383, %v597
        %v602 = vsub.f32 %v384, %v598
        %v603 = vxor.u32 %v599, 2147483648
        %v604 = vxor.u32 %v600, 2147483648
        %v605 = vxor.u32 %v601, 2147483648
        %v606 = vxor.u32 %v602, 2147483648
        %v607 = vmul.f32 %v603, 1.442695
        %v608 = vpow.pop %v607
        %v609 = vmul.f32 %v604, 1.442695
        %v610 = vpow.pop %v609
        %v611 = vmul.f32 %v605, 1.442695
        %v612 = vpow.pop %v611
        %v613 = vmul.f32 %v606, 1.442695
        %v614 = vpow.pop %v613
        %v615 = vadd.f32 %v608, 1.0
        %v616 = vadd.f32 %v610, 1.0
        %v617 = vadd.f32 %v612, 1.0
        %v618 = vadd.f32 %v614, 1.0
        %v619 = vrcp.pop %v615
        %v620 = vmul.f32 1.0, %v619
        %v621 = vrcp.pop %v616
        %v622 = vmul.f32 1.0, %v621
        %v623 = vrcp.pop %v617
        %v624 = vmul.f32 1.0, %v623
        %v625 = vrcp.pop %v618
        %v626 = vmul.f32 1.0, %v625
        %v627 = vand.u32 2147483647, %v372
        %v628 = vand.u32 2147483647, %v373
        %v629 = vand.u32 2147483647, %v374
        %v630 = vand.u32 2147483647, %v375
        %vm631 = vcmp.gt.f32.partialorder %v627, 1.0
        %vm632 = vcmp.gt.f32.partialorder %v628, 1.0
        %vm633 = vcmp.gt.f32.partialorder %v629, 1.0
        %vm634 = vcmp.gt.f32.partialorder %v630, 1.0
        %v635 = vand.u32 2147483647, %v377
        %v636 = vand.u32 2147483647, %v378
        %v637 = vand.u32 2147483647, %v379
        %v638 = vand.u32 2147483647, %v380
        %vm639 = vcmp.gt.f32.partialorder %v635, 1.0
        %vm640 = vcmp.gt.f32.partialorder %v636, 1.0
        %vm641 = vcmp.gt.f32.partialorder %v637, 1.0
        %vm642 = vcmp.gt.f32.partialorder %v638, 1.0
        %vm643 = vmor %vm631, %vm639
        %vm644 = vmor %vm632, %vm640
        %vm645 = vmor %vm633, %vm641
        %vm646 = vmor %vm634, %vm642
        %v647 = vsel %vm643, 0.0, %v620
        %v648 = vsel %vm644, 0.0, %v622
        %v649 = vsel %vm645, 0.0, %v624
        %v650 = vsel %vm646, 0.0, %v626
        %v651 = vpack.c.bf16 %v648, %v647
        %v652 = vpack.c.bf16 %v650, %v649
        %v655 = vunpack.c.l.b16 %v651
        %v656 = vunpack.c.h.b16 %v651
        %v657 = vunpack.c.l.b16 %v652
        %v658 = vunpack.c.h.b16 %v652
        %v659 = vpack.c.b16 %v655, %v655
        %v660 = vpack.c.b16 %v656, %v656
        %v661 = vpack.c.b16 %v657, %v657
        %v662 = vpack.c.b16 %v658, %v658
        %667 = vst [vmem:[%s358] sm:$0xf] %v659
        %668 = vst [vmem:[%s358 + $0x4] sm:$0xf] %v660
        %669 = vst [vmem:[%s358 + $0x8] sm:$0xf] %v661
        %670 = vst [vmem:[%s358 + $0xc] sm:$0xf] %v662
        %s671 = sand.u32 %s176, 1
        %s672 = scalar_lea.sflag [#allocation4], %s671
        %s673 = sand.u32 %s176, 1
        %s674 = smul.addr %s673, 16
        %s675 = scalar_lea.vmem [#allocation7], %s674
        // Predicated region
        $region49: #{tpu_custom_call.1} parent=39 // pred_check
          %p676 = pneg %p186
        $region50: #{tpu_custom_call.1} parent=39 // pred_check_branch
          %678 = sbr.rel (%p676) target = $region52
        $region51: #{tpu_custom_call.1} parent=39 // pred_region
          %s679 = smul.u32 4, %s29
          %s681 = ssub.s32 256, 256
          %682 = vsyncadd %s672, %s681
          %s683 = smul.addr %s30, 8
          %s684 = sadd.s32 %s679, %s683
          %s685 = smul.addr %s684, 64
          %s686 = scalar_lea.hbm %s5, %s685
          %s687 = sshll.u32 %s675, 4
          %s688 = int_to_ptr.vmem [resolvable:$true] %s687
          %693 = dma.vmem_to_hbm [thread:$0]  %s688, 256, %s686, %s672, 64, 64, 4
        $region52: #{tpu_custom_call.1} parent=39 // pred_fallthru
          _
      $region40: #{tpu_custom_call.1} parent=5 // pred_fallthru
        _
      %p694 = scmp.le.s32.totalorder 2, %s20
      // Predicated region
      $region53: #{tpu_custom_call.1} parent=5 // pred_check
        %p695 = pneg %p694
      $region54: #{tpu_custom_call.1} parent=5 // pred_check_branch
        %697 = sbr.rel (%p695) target = $region56
      $region55: #{tpu_custom_call.1} parent=5 // pred_region
        %s698 = ssub.s32 %s20, 2
        // Predicated region
        $region57: #{tpu_custom_call.1} parent=55 // pred_check
          %p699 = pneg %p192
        $region58: #{tpu_custom_call.1} parent=55 // pred_check_branch
          %701 = sbr.rel (%p699) target = $region60
        $region59: #{tpu_custom_call.1} parent=55 // pred_region
          %s702 = sand.u32 %s177, 1
          %s703 = scalar_lea.sflag [#allocation4], %s702
          %s704 = sand.u32 %s177, 1
          %s705 = smul.addr %s704, 16
          %s706 = scalar_lea.vmem [#allocation7], %s705
          %707 = dma.done %s703, 256
        $region60: #{tpu_custom_call.1} parent=55 // pred_fallthru
          _
      $region56: #{tpu_custom_call.1} parent=5 // pred_fallthru
        _
    $region6: #{tpu_custom_call.1} parent=1 // loop_footer
      %s24 = sadd.s32 1, %s20
    $region7: #{tpu_custom_call.1} parent=1 // loop_footer_branch
      %19 = sbr.rel target = $region3
    $region8: #{tpu_custom_call.1} parent=1 // loop_exit
      _
    %708 = vsyncpa [#allocation3], 1
    %s709 = scalar_lea.sflag [#allocation3], 1
    %710 = vsyncpa %s709, 1
    %711 = vsyncpa [#allocation6], 1
    %s712 = scalar_lea.sflag [#allocation6], 1
    %713 = vsyncpa %s712, 1
    %714 = vsyncpa [#allocation4], 1
    %s715 = scalar_lea.sflag [#allocation4], 1
    %716 = vsyncpa %s715, 1

</llo_original>
